<compile_context>
chip_gen: v7x
topology: tpu7x:2x2x1
jax: 0.10.0
libtpu: 0.0.40
codegen_flags: <defaults>
</compile_context>

<pallas_src>
import functools

import jax
import jax.numpy as jnp
from jax.experimental import pallas as pl
from jax.experimental.pallas import tpu as pltpu


def _round_up(x, m):
    return (x + m - 1) // m * m


def _cdiv(a, b):
    return -(-a // b)


# ----------------------------- Pallas kernel -----------------------------

def _mlp_kernel(x_ref, *refs, n_layers, row_output, compute_dtype):
    """Fused MLP for one batch tile.

    x_ref : (TB, D0p)  input tile (padded features), compute_dtype
    refs  : (w0, b0, ..., w_{L-1}, b_{L-1}, o_ref)
            hidden w_i : (D_ip, D_{i+1}p) compute_dtype (transposed, zero-padded)
            hidden b_i : (1, D_{i+1}p)    f32
            last  (row_output): w (1, D_{L-1}p) PyTorch layout, b (1, 1)
    o_ref : (1, TB) f32 if row_output else (TB, DLp) f32
    """
    o_ref = refs[-1]
    h = x_ref[...]                                             # (TB, D0p)
    for i in range(n_layers - 1):                              # Linear + ReLU
        w = refs[2 * i][...]
        b = refs[2 * i + 1][...]
        z = jnp.dot(h, w, preferred_element_type=jnp.float32) + b   # MXU, f32 acc
        h = jnp.maximum(z, 0.0).astype(compute_dtype)                # ReLU (VPU)
    w = refs[2 * (n_layers - 1)][...]
    b = refs[2 * (n_layers - 1) + 1][...]
    if row_output:
        # output_size == 1: contract against the (1, Dp) weight row so the result is
        # directly (1, TB) -- batch on the lane axis, lane-dense store, no dead lanes.
        z = jnp.einsum("od,bd->ob", w, h,
                       preferred_element_type=jnp.float32) + b       # (1, TB)
    else:
        z = jnp.dot(h, w, preferred_element_type=jnp.float32) + b    # (TB, DLp)
    # Sigmoid: exp and approximate reciprocal both run on the otherwise-idle EUP slot.
    o_ref[...] = pl.reciprocal(1.0 + jnp.exp(-z), approx=True).astype(o_ref.dtype)


# ----------------------------- parameter preparation (hoisted) -----------------------------

def prepare_params(weights, biases, *, use_bf16=False):
    """Pad/transpose parameters ONCE (outside the per-call forward path).

    weights[i]: PyTorch-layout (out_i, in_i); biases[i]: (out_i,).
    Returns (flat_params, meta) to pass to discriminator_fc_forward.
    """
    n_layers = len(weights)
    dims = [weights[0].shape[1]] + [w.shape[0] for w in weights]
    pdims = [_round_up(d, 128) for d in dims]               # lane-dense feature dims
    wdtype = jnp.bfloat16 if use_bf16 else jnp.float32
    row_output = dims[-1] == 1

    flat = []
    for li in range(n_layers):
        w = jnp.asarray(weights[li], jnp.float32)
        b = jnp.asarray(biases[li], jnp.float32)
        if row_output and li == n_layers - 1:
            # Keep PyTorch (1, in) layout; pad only the contracting dim.
            wp = (jnp.zeros((1, pdims[li]), wdtype)
                  .at[:, :dims[li]].set(w.astype(wdtype)))
            bp = b.reshape(1, 1)                            # (1, 1) f32
        else:
            wp = (jnp.zeros((pdims[li], pdims[li + 1]), wdtype)
                  .at[:dims[li], :dims[li + 1]].set(w.T.astype(wdtype)))
            bp = (jnp.zeros((1, pdims[li + 1]), jnp.float32)
                  .at[0, :dims[li + 1]].set(b))
        flat += [wp, bp]

    meta = dict(dims=tuple(dims), pdims=tuple(pdims), n_layers=n_layers,
                row_output=row_output, compute_dtype=wdtype)
    return flat, meta


# ----------------------------- tiling / VMEM sizing -----------------------------

def _batch_tiling(B, block_b):
    """Pick (TB, n_tiles).  Small batches: one round_up(B, 8) tile.  Larger batches:
    TB a multiple of 128 (lane-dense (1, TB) output store), >= 2 tiles (megacore on
    v7x), and tightened so padding waste stays below one 128-row granule per tile."""
    if B <= 128:
        return _round_up(max(B, 1), 8), 1
    block_b = max(128, _round_up(block_b, 128))
    n = max(2, _cdiv(B, block_b))
    tb = min(block_b, _round_up(_cdiv(B, n), 128))
    while tb > 128:                                    # add tiles while it cuts padding
        tb2 = _round_up(_cdiv(B, n + 1), 128)
        if tb2 * (n + 1) < tb * n:
            n, tb = n + 1, tb2
        else:
            break
    n = _cdiv(B, tb)
    return tb, n


def _vmem_limit_bytes(flat_params, TB, pdims, row_output, compute_dtype,
                      single_buffer_params):
    itemsize = jnp.dtype(compute_dtype).itemsize
    param_bytes = sum(int(p.size) * jnp.dtype(p.dtype).itemsize for p in flat_params)
    param_bytes *= 1 if single_buffer_params else 2    # pipeline buffer copies
    x_tile = TB * pdims[0] * itemsize
    out_tile = (TB * 4) if row_output else (TB * pdims[-1] * 4)
    io_bytes = 2 * (x_tile + out_tile)                 # double-buffered streams
    act_bytes = 4 * TB * max(pdims) * 4                # f32 intermediates + headroom
    needed = param_bytes + io_bytes + act_bytes
    try:
        cap = int(pltpu.get_tpu_info().vmem_capacity_bytes)
    except Exception:
        cap = 64 * 1024 * 1024                         # conservative (v7x per-TC VMEM)
    limit = min(max(needed + (8 << 20), 64 << 20), (cap * 7) // 8)
    return max(limit, needed)


# ----------------------------- forward -----------------------------

def _build_pallas_call(meta, TB, n_tiles, Bp, vmem_limit, single_buffer_params):
    dims, pdims = meta["dims"], meta["pdims"]
    n_layers, row_output = meta["n_layers"], meta["row_output"]
    cdt = meta["compute_dtype"]

    # Parameters have a constant block index across the batch grid; single-buffer them.
    param_kwargs = dict(pipeline_mode=pl.Buffered(1)) if single_buffer_params else {}

    in_specs = [pl.BlockSpec((TB, pdims[0]), lambda i: (i, 0))]
    for li in range(n_layers):
        if row_output and li == n_layers - 1:
            w_shape, b_shape = (1, pdims[li]), (1, 1)
        else:
            w_shape, b_shape = (pdims[li], pdims[li + 1]), (1, pdims[li + 1])
        in_specs.append(pl.BlockSpec(w_shape, lambda i: (0, 0), **param_kwargs))
        in_specs.append(pl.BlockSpec(b_shape, lambda i: (0, 0), **param_kwargs))

    if row_output:
        out_shape = jax.ShapeDtypeStruct((1, Bp), jnp.float32)
        out_specs = pl.BlockSpec((1, TB), lambda i: (0, i))
    else:
        out_shape = jax.ShapeDtypeStruct((Bp, pdims[-1]), jnp.float32)
        out_specs = pl.BlockSpec((TB, pdims[-1]), lambda i: (i, 0))

    return pl.pallas_call(
        functools.partial(_mlp_kernel, n_layers=n_layers, row_output=row_output,
                          compute_dtype=cdt),
        out_shape=out_shape,
        grid_spec=pltpu.PrefetchScalarGridSpec(
            num_scalar_prefetch=0,
            grid=(n_tiles,),
            in_specs=in_specs,
            out_specs=out_specs),
        compiler_params=pltpu.CompilerParams(
            dimension_semantics=("parallel",),          # batch tiles -> megacore (v7x)
            vmem_limit_bytes=vmem_limit),
    )


def discriminator_fc_forward(x, flat_params, meta, *, block_b=512):
    """DiscriminatorFC forward.  x: (B, input_size); returns (B*output_size, 1)."""
    dims, pdims = meta["dims"], meta["pdims"]
    row_output = meta["row_output"]
    cdt = meta["compute_dtype"]
    B = x.shape[0]
    assert x.shape[1] == dims[0], (x.shape, dims)

    TB, n_tiles = _batch_tiling(B, block_b)
    Bp = TB * n_tiles
    xp = jnp.zeros((Bp, pdims[0]), cdt).at[:B, :dims[0]].set(x.astype(cdt))

    def run(single_buffer_params):
        vmem_limit = _vmem_limit_bytes(flat_params, TB, pdims, row_output, cdt,
                                       single_buffer_params)
        call = _build_pallas_call(meta, TB, n_tiles, Bp, vmem_limit,
                                  single_buffer_params)
        return call(xp, *flat_params)

    try:
        out = run(True)
    except Exception:
        # pl.Buffered(1) (single-buffered resident params) not supported on this
        # jax/Mosaic build -- fall back to default double-buffering.
        out = run(False)

    if row_output:
        return out[0, :B].reshape(-1, 1)                 # out.view(-1, 1)
    return out[:B, :dims[-1]].reshape(-1, 1)


# ----------------------------- params / reference -----------------------------

def init_params(key, input_size, output_size, hidden_dims):
    weights, biases = [], []
    dims = [input_size] + list(hidden_dims) + [output_size]
    for i in range(len(dims) - 1):
        key, k1, k2 = jax.random.split(key, 3)
        bound = 1.0 / jnp.sqrt(dims[i])
        weights.append(jax.random.uniform(k1, (dims[i + 1], dims[i]), jnp.float32,
                                          -bound, bound))
        biases.append(jax.random.uniform(k2, (dims[i + 1],), jnp.float32,
                                         -bound, bound))
    return weights, biases


def reference_forward(x, weights, biases):
    """Pure-JAX reference with the same PyTorch semantics."""
    h = x.astype(jnp.float32)
    n = len(weights)
    for i, (w, b) in enumerate(zip(weights, biases)):
        h = h @ w.T.astype(jnp.float32) + b.astype(jnp.float32)
        if i < n - 1:
            h = jnp.maximum(h, 0.0)
        else:
            h = jax.nn.sigmoid(h)
    return h.reshape(-1, 1)


if __name__ == "__main__":
    key = jax.random.PRNGKey(0)
    input_size, output_size = 64, 1
    hidden_dims = [32, 32]

    key, kp = jax.random.split(key)
    weights, biases = init_params(kp, input_size, output_size, hidden_dims)

    params_f32, meta_f32 = prepare_params(weights, biases)                 # parity path
    params_bf16, meta_bf16 = prepare_params(weights, biases, use_bf16=True)  # opt-in

    # batch=2 exercises the single-tile path; batch=300 exercises multi-tile
    # (3 x 128-row tiles) with the lane-major (1, Bp) output layout.
    for batch in (2, 300):
        key, kx = jax.random.split(key)
        x = jax.random.normal(kx, (batch, input_size), jnp.float32)
        ref = jax.block_until_ready(reference_forward(x, weights, biases))

        out = jax.block_until_ready(discriminator_fc_forward(x, params_f32, meta_f32))
        assert out.shape == (batch * output_size, 1), out.shape
        # Tolerance covers the EUP approximate-reciprocal sigmoid.
        assert jnp.allclose(out, ref, atol=5e-3, rtol=5e-3), \
            float(jnp.max(jnp.abs(out - ref)))

        out16 = jax.block_until_ready(discriminator_fc_forward(x, params_bf16,
                                                               meta_bf16))
        assert out16.shape == (batch * output_size, 1), out16.shape
        assert jnp.allclose(out16, ref, atol=3e-2, rtol=3e-2), \
            float(jnp.max(jnp.abs(out16 - ref)))

    print("KERNEL_OK")
</pallas_src>

<mosaic_0001>
module attributes {stable_mosaic.version = 11 : i64} {
  func.func @_mlp_kernel(%arg0: i32, %arg1: memref<8x128xf32, #tpu.memory_space<vmem>>, %arg2: memref<128x128xf32, #tpu.memory_space<vmem>>, %arg3: memref<1x128xf32, #tpu.memory_space<vmem>>, %arg4: memref<128x128xf32, #tpu.memory_space<vmem>>, %arg5: memref<1x128xf32, #tpu.memory_space<vmem>>, %arg6: memref<1x128xf32, #tpu.memory_space<vmem>>, %arg7: memref<1x1xf32, #tpu.memory_space<vmem>>, %arg8: memref<1x8xf32, #tpu.memory_space<vmem>>) attributes {dimension_semantics = [#tpu.dimension_semantics<parallel>], iteration_bounds = array<i64: 1>, scalar_prefetch = 0 : i64, scratch_operands = 0 : i64, tpu.core_type = #tpu.core_type<tc>, window_params = [{transform_indices = @transform_0, window_bounds = array<i64: 8, 128>}, {pipeline_mode = #tpu.pipeline_mode<synchronous>, transform_indices = @transform_1, window_bounds = array<i64: 128, 128>}, {pipeline_mode = #tpu.pipeline_mode<synchronous>, transform_indices = @transform_2, window_bounds = array<i64: 1, 128>}, {pipeline_mode = #tpu.pipeline_mode<synchronous>, transform_indices = @transform_3, window_bounds = array<i64: 128, 128>}, {pipeline_mode = #tpu.pipeline_mode<synchronous>, transform_indices = @transform_4, window_bounds = array<i64: 1, 128>}, {pipeline_mode = #tpu.pipeline_mode<synchronous>, transform_indices = @transform_5, window_bounds = array<i64: 1, 128>}, {pipeline_mode = #tpu.pipeline_mode<synchronous>, transform_indices = @transform_6, window_bounds = array<i64: 1, 1>}, {transform_indices = @transform_7, window_bounds = array<i64: 1, 8>}]} {
    %c0 = arith.constant 0 : index
    %c0_0 = arith.constant 0 : index
    %0 = vector.load %arg1[%c0, %c0_0] : memref<8x128xf32, #tpu.memory_space<vmem>>, vector<8x128xf32>
    %c0_1 = arith.constant 0 : index
    %c0_2 = arith.constant 0 : index
    %1 = vector.load %arg2[%c0_1, %c0_2] : memref<128x128xf32, #tpu.memory_space<vmem>>, vector<128x128xf32>
    %c0_3 = arith.constant 0 : index
    %c0_4 = arith.constant 0 : index
    %2 = vector.load %arg3[%c0_3, %c0_4] : memref<1x128xf32, #tpu.memory_space<vmem>>, vector<1x128xf32>
    %cst = arith.constant dense<0.000000e+00> : vector<8x128xf32>
    %3 = tpu.matmul %0, %1, %cst {dimension_numbers = #tpu.dot_dimension_numbers<[1], [0], [0], [1], [0, 0, 1, 1], [], []>} : vector<8x128xf32>, vector<128x128xf32>, vector<8x128xf32> -> vector<8x128xf32>
    %4 = vector.broadcast %2 : vector<1x128xf32> to vector<8x128xf32>
    %5 = arith.addf %3, %4 : vector<8x128xf32>
    %cst_5 = arith.constant 0.000000e+00 : f32
    %6 = vector.broadcast %cst_5 : f32 to vector<8x128xf32>
    %7 = arith.maximumf %5, %6 : vector<8x128xf32>
    %c0_6 = arith.constant 0 : index
    %c0_7 = arith.constant 0 : index
    %8 = vector.load %arg4[%c0_6, %c0_7] : memref<128x128xf32, #tpu.memory_space<vmem>>, vector<128x128xf32>
    %c0_8 = arith.constant 0 : index
    %c0_9 = arith.constant 0 : index
    %9 = vector.load %arg5[%c0_8, %c0_9] : memref<1x128xf32, #tpu.memory_space<vmem>>, vector<1x128xf32>
    %cst_10 = arith.constant dense<0.000000e+00> : vector<8x128xf32>
    %10 = tpu.matmul %7, %8, %cst_10 {dimension_numbers = #tpu.dot_dimension_numbers<[1], [0], [0], [1], [0, 0, 1, 1], [], []>} : vector<8x128xf32>, vector<128x128xf32>, vector<8x128xf32> -> vector<8x128xf32>
    %11 = vector.broadcast %9 : vector<1x128xf32> to vector<8x128xf32>
    %12 = arith.addf %10, %11 : vector<8x128xf32>
    %cst_11 = arith.constant 0.000000e+00 : f32
    %13 = vector.broadcast %cst_11 : f32 to vector<8x128xf32>
    %14 = arith.maximumf %12, %13 : vector<8x128xf32>
    %c0_12 = arith.constant 0 : index
    %c0_13 = arith.constant 0 : index
    %15 = vector.load %arg6[%c0_12, %c0_13] : memref<1x128xf32, #tpu.memory_space<vmem>>, vector<1x128xf32>
    %c0_14 = arith.constant 0 : index
    %c0_15 = arith.constant 0 : index
    %16 = vector.load %arg7[%c0_14, %c0_15] : memref<1x1xf32, #tpu.memory_space<vmem>>, vector<1x1xf32>
    "tpu.trace_start"() <{level = 10 : i32, message = "od,bd->ob"}> : () -> ()
    %cst_16 = arith.constant dense<0.000000e+00> : vector<1x8xf32>
    %17 = tpu.matmul %15, %14, %cst_16 {dimension_numbers = #tpu.dot_dimension_numbers<[1], [1], [0], [0], [0, 0, 1, 0], [], []>} : vector<1x128xf32>, vector<8x128xf32>, vector<1x8xf32> -> vector<1x8xf32>
    "tpu.trace_stop"() : () -> ()
    %18 = vector.broadcast %16 : vector<1x1xf32> to vector<1x8xf32>
    %19 = arith.addf %17, %18 : vector<1x8xf32>
    %cst_17 = arith.constant 0.000000e+00 : f32
    %20 = vector.broadcast %cst_17 : f32 to vector<1x8xf32>
    %21 = arith.subf %20, %19 : vector<1x8xf32>
    %22 = math.exp %21 : vector<1x8xf32>
    %cst_18 = arith.constant 1.000000e+00 : f32
    %23 = vector.broadcast %cst_18 : f32 to vector<1x8xf32>
    %24 = arith.addf %23, %22 : vector<1x8xf32>
    %25 = tpu.reciprocal %24 {approx = true} : vector<1x8xf32> -> vector<1x8xf32>
    %c0_19 = arith.constant 0 : index
    %c0_20 = arith.constant 0 : index
    %26 = vector.load %arg8[%c0_19, %c0_20] : memref<1x8xf32, #tpu.memory_space<vmem>>, vector<1x8xf32>
    tpu.vector_store %arg8[%c0_19, %c0_20], %25 {strides = array<i32>} : memref<1x8xf32, #tpu.memory_space<vmem>>, vector<1x8xf32>,
    return
  }
  func.func @transform_0(%arg0: i32) -> (i32, i32) {
    %c0_i32 = arith.constant 0 : i32
    %c0_i32_0 = arith.constant 0 : i32
    return %arg0, %c0_i32 : i32, i32
  }
  func.func @transform_1(%arg0: i32) -> (i32, i32) {
    %c0_i32 = arith.constant 0 : i32
    %c0_i32_0 = arith.constant 0 : i32
    %c0_i32_1 = arith.constant 0 : i32
    return %c0_i32, %c0_i32_0 : i32, i32
  }
  func.func @transform_2(%arg0: i32) -> (i32, i32) {
    %c0_i32 = arith.constant 0 : i32
    %c0_i32_0 = arith.constant 0 : i32
    %c0_i32_1 = arith.constant 0 : i32
    return %c0_i32, %c0_i32_0 : i32, i32
  }
  func.func @transform_3(%arg0: i32) -> (i32, i32) {
    %c0_i32 = arith.constant 0 : i32
    %c0_i32_0 = arith.constant 0 : i32
    %c0_i32_1 = arith.constant 0 : i32
    return %c0_i32, %c0_i32_0 : i32, i32
  }
  func.func @transform_4(%arg0: i32) -> (i32, i32) {
    %c0_i32 = arith.constant 0 : i32
    %c0_i32_0 = arith.constant 0 : i32
    %c0_i32_1 = arith.constant 0 : i32
    return %c0_i32, %c0_i32_0 : i32, i32
  }
  func.func @transform_5(%arg0: i32) -> (i32, i32) {
    %c0_i32 = arith.constant 0 : i32
    %c0_i32_0 = arith.constant 0 : i32
    %c0_i32_1 = arith.constant 0 : i32
    return %c0_i32, %c0_i32_0 : i32, i32
  }
  func.func @transform_6(%arg0: i32) -> (i32, i32) {
    %c0_i32 = arith.constant 0 : i32
    %c0_i32_0 = arith.constant 0 : i32
    %c0_i32_1 = arith.constant 0 : i32
    return %c0_i32, %c0_i32_0 : i32, i32
  }
  func.func @transform_7(%arg0: i32) -> (i32, i32) {
    %c0_i32 = arith.constant 0 : i32
    %c0_i32_0 = arith.constant 0 : i32
    return %c0_i32, %arg0 : i32, i32
  }
}

module attributes {stable_mosaic.version = 11 : i64} {
  func.func @_mlp_kernel(%arg0: i32, %arg1: memref<8x128xf32, #tpu.memory_space<vmem>>, %arg2: memref<128x128xf32, #tpu.memory_space<vmem>>, %arg3: memref<1x128xf32, #tpu.memory_space<vmem>>, %arg4: memref<128x128xf32, #tpu.memory_space<vmem>>, %arg5: memref<1x128xf32, #tpu.memory_space<vmem>>, %arg6: memref<1x128xf32, #tpu.memory_space<vmem>>, %arg7: memref<1x1xf32, #tpu.memory_space<vmem>>, %arg8: memref<1x8xf32, #tpu.memory_space<vmem>>) attributes {dimension_semantics = [#tpu.dimension_semantics<parallel>], iteration_bounds = array<i64: 1>, scalar_prefetch = 0 : i64, scratch_operands = 0 : i64, tpu.core_type = #tpu.core_type<tc>, window_params = [{transform_indices = @transform_0, window_bounds = array<i64: 8, 128>}, {pipeline_mode = #tpu.pipeline_mode<synchronous>, transform_indices = @transform_1, window_bounds = array<i64: 128, 128>}, {pipeline_mode = #tpu.pipeline_mode<synchronous>, transform_indices = @transform_2, window_bounds = array<i64: 1, 128>}, {pipeline_mode = #tpu.pipeline_mode<synchronous>, transform_indices = @transform_3, window_bounds = array<i64: 128, 128>}, {pipeline_mode = #tpu.pipeline_mode<synchronous>, transform_indices = @transform_4, window_bounds = array<i64: 1, 128>}, {pipeline_mode = #tpu.pipeline_mode<synchronous>, transform_indices = @transform_5, window_bounds = array<i64: 1, 128>}, {pipeline_mode = #tpu.pipeline_mode<synchronous>, transform_indices = @transform_6, window_bounds = array<i64: 1, 1>}, {transform_indices = @transform_7, window_bounds = array<i64: 1, 8>}]} {
    %c0 = arith.constant 0 : index
    %c0_0 = arith.constant 0 : index
    %0 = vector.load %arg1[%c0, %c0_0] : memref<8x128xf32, #tpu.memory_space<vmem>>, vector<8x128xf32>
    %c0_1 = arith.constant 0 : index
    %c0_2 = arith.constant 0 : index
    %1 = vector.load %arg2[%c0_1, %c0_2] : memref<128x128xf32, #tpu.memory_space<vmem>>, vector<128x128xf32>
    %c0_3 = arith.constant 0 : index
    %c0_4 = arith.constant 0 : index
    %2 = vector.load %arg3[%c0_3, %c0_4] : memref<1x128xf32, #tpu.memory_space<vmem>>, vector<1x128xf32>
    %cst = arith.constant dense<0.000000e+00> : vector<8x128xf32>
    %3 = tpu.matmul %0, %1, %cst {dimension_numbers = #tpu.dot_dimension_numbers<[1], [0], [0], [1], [0, 0, 1, 1], [], []>} : vector<8x128xf32>, vector<128x128xf32>, vector<8x128xf32> -> vector<8x128xf32>
    %4 = vector.broadcast %2 : vector<1x128xf32> to vector<8x128xf32>
    %5 = arith.addf %3, %4 : vector<8x128xf32>
    %cst_5 = arith.constant 0.000000e+00 : f32
    %6 = vector.broadcast %cst_5 : f32 to vector<8x128xf32>
    %7 = arith.maximumf %5, %6 : vector<8x128xf32>
    %c0_6 = arith.constant 0 : index
    %c0_7 = arith.constant 0 : index
    %8 = vector.load %arg4[%c0_6, %c0_7] : memref<128x128xf32, #tpu.memory_space<vmem>>, vector<128x128xf32>
    %c0_8 = arith.constant 0 : index
    %c0_9 = arith.constant 0 : index
    %9 = vector.load %arg5[%c0_8, %c0_9] : memref<1x128xf32, #tpu.memory_space<vmem>>, vector<1x128xf32>
    %cst_10 = arith.constant dense<0.000000e+00> : vector<8x128xf32>
    %10 = tpu.matmul %7, %8, %cst_10 {dimension_numbers = #tpu.dot_dimension_numbers<[1], [0], [0], [1], [0, 0, 1, 1], [], []>} : vector<8x128xf32>, vector<128x128xf32>, vector<8x128xf32> -> vector<8x128xf32>
    %11 = vector.broadcast %9 : vector<1x128xf32> to vector<8x128xf32>
    %12 = arith.addf %10, %11 : vector<8x128xf32>
    %cst_11 = arith.constant 0.000000e+00 : f32
    %13 = vector.broadcast %cst_11 : f32 to vector<8x128xf32>
    %14 = arith.maximumf %12, %13 : vector<8x128xf32>
    %c0_12 = arith.constant 0 : index
    %c0_13 = arith.constant 0 : index
    %15 = vector.load %arg6[%c0_12, %c0_13] : memref<1x128xf32, #tpu.memory_space<vmem>>, vector<1x128xf32>
    %c0_14 = arith.constant 0 : index
    %c0_15 = arith.constant 0 : index
    %16 = vector.load %arg7[%c0_14, %c0_15] : memref<1x1xf32, #tpu.memory_space<vmem>>, vector<1x1xf32>
    "tpu.trace_start"() <{level = 10 : i32, message = "od,bd->ob"}> : () -> ()
    %cst_16 = arith.constant dense<0.000000e+00> : vector<1x8xf32>
    %17 = tpu.matmul %15, %14, %cst_16 {dimension_numbers = #tpu.dot_dimension_numbers<[1], [1], [0], [0], [0, 0, 1, 0], [], []>} : vector<1x128xf32>, vector<8x128xf32>, vector<1x8xf32> -> vector<1x8xf32>
    "tpu.trace_stop"() : () -> ()
    %18 = vector.broadcast %16 : vector<1x1xf32> to vector<1x8xf32>
    %19 = arith.addf %17, %18 : vector<1x8xf32>
    %cst_17 = arith.constant 0.000000e+00 : f32
    %20 = vector.broadcast %cst_17 : f32 to vector<1x8xf32>
    %21 = arith.subf %20, %19 : vector<1x8xf32>
    %22 = math.exp %21 : vector<1x8xf32>
    %cst_18 = arith.constant 1.000000e+00 : f32
    %23 = vector.broadcast %cst_18 : f32 to vector<1x8xf32>
    %24 = arith.addf %23, %22 : vector<1x8xf32>
    %25 = tpu.reciprocal %24 {approx = true} : vector<1x8xf32> -> vector<1x8xf32>
    %c0_19 = arith.constant 0 : index
    %c0_20 = arith.constant 0 : index
    %26 = vector.load %arg8[%c0_19, %c0_20] : memref<1x8xf32, #tpu.memory_space<vmem>>, vector<1x8xf32>
    tpu.vector_store %arg8[%c0_19, %c0_20], %25 {strides = array<i32>} : memref<1x8xf32, #tpu.memory_space<vmem>>, vector<1x8xf32>,
    return
  }
  func.func @transform_0(%arg0: i32) -> (i32, i32) {
    %c0_i32 = arith.constant 0 : i32
    %c0_i32_0 = arith.constant 0 : i32
    return %arg0, %c0_i32 : i32, i32
  }
  func.func @transform_1(%arg0: i32) -> (i32, i32) {
    %c0_i32 = arith.constant 0 : i32
    %c0_i32_0 = arith.constant 0 : i32
    %c0_i32_1 = arith.constant 0 : i32
    return %c0_i32, %c0_i32_0 : i32, i32
  }
  func.func @transform_2(%arg0: i32) -> (i32, i32) {
    %c0_i32 = arith.constant 0 : i32
    %c0_i32_0 = arith.constant 0 : i32
    %c0_i32_1 = arith.constant 0 : i32
    return %c0_i32, %c0_i32_0 : i32, i32
  }
  func.func @transform_3(%arg0: i32) -> (i32, i32) {
    %c0_i32 = arith.constant 0 : i32
    %c0_i32_0 = arith.constant 0 : i32
    %c0_i32_1 = arith.constant 0 : i32
    return %c0_i32, %c0_i32_0 : i32, i32
  }
  func.func @transform_4(%arg0: i32) -> (i32, i32) {
    %c0_i32 = arith.constant 0 : i32
    %c0_i32_0 = arith.constant 0 : i32
    %c0_i32_1 = arith.constant 0 : i32
    return %c0_i32, %c0_i32_0 : i32, i32
  }
  func.func @transform_5(%arg0: i32) -> (i32, i32) {
    %c0_i32 = arith.constant 0 : i32
    %c0_i32_0 = arith.constant 0 : i32
    %c0_i32_1 = arith.constant 0 : i32
    return %c0_i32, %c0_i32_0 : i32, i32
  }
  func.func @transform_6(%arg0: i32) -> (i32, i32) {
    %c0_i32 = arith.constant 0 : i32
    %c0_i32_0 = arith.constant 0 : i32
    %c0_i32_1 = arith.constant 0 : i32
    return %c0_i32, %c0_i32_0 : i32, i32
  }
  func.func @transform_7(%arg0: i32) -> (i32, i32) {
    %c0_i32 = arith.constant 0 : i32
    %c0_i32_0 = arith.constant 0 : i32
    return %c0_i32, %arg0 : i32, i32
  }
}

</mosaic_0001>

<llo_original>
// kernel: tpu_custom_call.1
$region0: #{tpu_custom_call.1}
  #allocation0 [shape = 'u32[]', space=smem, size = 0x4, offset = 0x4, fixed_abs, tag = 'smem constant byte address 0x4 - core index']
  #allocation1 [shape = 'u32[144,128]{1,0:T(1,128)}', space=vmem, size = 0x12000, scoped, tag = 'internal scratch']
  #allocation2 [shape = 'f32[1,1]{1,0:T(1,128)S(1)}', space=vmem, size = 0x200, scoped, tag = 'scoped memory for tpu_custom_call.1']
  %s0 = inlined_call_operand.hbm [shape: f32[8,128], index: 0, kind: input, shape index: {}]
  %s1 = inlined_call_operand.hbm [shape: f32[128,128], index: 1, kind: input, shape index: {}]
  %s2 = inlined_call_operand.vmem [shape: f32[1,128], index: 2, kind: input, shape index: {}]
  %s3 = inlined_call_operand.hbm [shape: f32[128,128], index: 3, kind: input, shape index: {}]
  %s4 = inlined_call_operand.vmem [shape: f32[1,128], index: 4, kind: input, shape index: {}]
  %s5 = inlined_call_operand.vmem [shape: f32[1,128], index: 5, kind: input, shape index: {}]
  %s6 = inlined_call_operand.<no memory space> [shape: f32[1,1], index: 6, kind: input, shape index: {}]
  %s7 = inlined_call_operand.hbm [shape: f32[1,8], index: 7, kind: output, shape index: {}]
  %s8 = sld [smem:[#allocation0]]
  $region50: #{tpu_custom_call.1} parent=0
    _
  %s10 = ssub.s32 1, %s8
  %s11 = scalar_select 0, %s10, %s8
  %v12 = vstv %s6
  %13 = vst [vmem:[#allocation2] sm:$0x1] %v12
  $region1: #{tpu_custom_call.1} parent=0
    #allocation3 [shape = 'u8[4096]{0}', space=vmem, size = 0x1000, scoped, tag = 'input window, operand 0, single buffered']
    #allocation4 [shape = 's32[1]{0}', space=sflag, size = 0x4, scoped, tag = 'scoped memory for tpu_custom_call.1']
    #allocation5 [shape = 's32[1]{0}', space=sflag, size = 0x4, scoped, tag = 'scoped memory for tpu_custom_call.1']
    #allocation6 [shape = 'u8[65536]{0}', space=vmem, size = 0x10000, scoped, tag = 'input window, operand 1, single buffered']
    #allocation7 [shape = 's32[1]{0}', space=sflag, size = 0x4, scoped, tag = 'scoped memory for tpu_custom_call.1']
    #allocation8 [shape = 'u8[65536]{0}', space=vmem, size = 0x10000, scoped, tag = 'input window, operand 3, single buffered']
    #allocation9 [shape = 'u8[512]{0}', space=vmem, size = 0x400, scoped, tag = 'output window, operand 0, single buffered']
    %14 = vsyncpa [#allocation4], 0
    %15 = vsyncpa [#allocation7], 0
    %16 = vsyncpa [#allocation5], 0
    // Predicated region
    $region2: #{tpu_custom_call.1} parent=1 // pred_check
      _
    $region3: #{tpu_custom_call.1} parent=1 // pred_check_branch
      %18 = sbr.rel (0) target = $region5
    $region4: #{tpu_custom_call.1} parent=1 // pred_region
      %s20 = ssub.s32 128, 128
      %21 = vsyncadd [#allocation4], %s20
      %s23 = sshll.u32 [#allocation3], 4
      %s24 = int_to_ptr.vmem [resolvable:$true] %s23
      %26 = dma.hbm_to_vmem [thread:$0]  %s0, 128, %s24, [#allocation4]
    $region5: #{tpu_custom_call.1} parent=1 // pred_fallthru
      _
    // Predicated region
    $region6: #{tpu_custom_call.1} parent=1 // pred_check
      _
    $region7: #{tpu_custom_call.1} parent=1 // pred_check_branch
      %28 = sbr.rel (0) target = $region9
    $region8: #{tpu_custom_call.1} parent=1 // pred_region
      %s30 = ssub.s32 2048, 2048
      %31 = vsyncadd [#allocation7], %s30
      %s32 = sshll.u32 [#allocation6], 4
      %s33 = int_to_ptr.vmem [resolvable:$true] %s32
      %38 = dma.hbm_to_vmem [thread:$0]  %s1, 2048, %s33, [#allocation7], 128, 128, 8
    $region9: #{tpu_custom_call.1} parent=1 // pred_fallthru
      _
    // Predicated region
    $region10: #{tpu_custom_call.1} parent=1 // pred_check
      _
    $region11: #{tpu_custom_call.1} parent=1 // pred_check_branch
      %40 = sbr.rel (0) target = $region13
    $region12: #{tpu_custom_call.1} parent=1 // pred_region
      _
    $region13: #{tpu_custom_call.1} parent=1 // pred_fallthru
      _
    // Predicated region
    $region14: #{tpu_custom_call.1} parent=1 // pred_check
      _
    $region15: #{tpu_custom_call.1} parent=1 // pred_check_branch
      %42 = sbr.rel (0) target = $region17
    $region16: #{tpu_custom_call.1} parent=1 // pred_region
      %s44 = ssub.s32 2048, 2048
      %45 = vsyncadd [#allocation7], %s44
      %s46 = sshll.u32 [#allocation8], 4
      %s47 = int_to_ptr.vmem [resolvable:$true] %s46
      %52 = dma.hbm_to_vmem [thread:$0]  %s3, 2048, %s47, [#allocation7], 128, 128, 8
    $region17: #{tpu_custom_call.1} parent=1 // pred_fallthru
      _
    // Predicated region
    $region18: #{tpu_custom_call.1} parent=1 // pred_check
      _
    $region19: #{tpu_custom_call.1} parent=1 // pred_check_branch
      %54 = sbr.rel (0) target = $region21
    $region20: #{tpu_custom_call.1} parent=1 // pred_region
      _
    $region21: #{tpu_custom_call.1} parent=1 // pred_fallthru
      _
    // Predicated region
    $region22: #{tpu_custom_call.1} parent=1 // pred_check
      _
    $region23: #{tpu_custom_call.1} parent=1 // pred_check_branch
      %56 = sbr.rel (0) target = $region25
    $region24: #{tpu_custom_call.1} parent=1 // pred_region
      _
    $region25: #{tpu_custom_call.1} parent=1 // pred_fallthru
      _
    // Predicated region
    $region26: #{tpu_custom_call.1} parent=1 // pred_check
      _
    $region27: #{tpu_custom_call.1} parent=1 // pred_check_branch
      %58 = sbr.rel (0) target = $region29
    $region28: #{tpu_custom_call.1} parent=1 // pred_region
      _
    $region29: #{tpu_custom_call.1} parent=1 // pred_fallthru
      _
    // Predicated region
    $region30: #{tpu_custom_call.1} parent=1 // pred_check
      _
    $region31: #{tpu_custom_call.1} parent=1 // pred_check_branch
      %60 = sbr.rel (0) target = $region33
    $region32: #{tpu_custom_call.1} parent=1 // pred_region
      %61 = dma.done [#allocation4], 128
    $region33: #{tpu_custom_call.1} parent=1 // pred_fallthru
      _
    // Predicated region
    $region34: #{tpu_custom_call.1} parent=1 // pred_check
      _
    $region35: #{tpu_custom_call.1} parent=1 // pred_check_branch
      %63 = sbr.rel (0) target = $region37
    $region36: #{tpu_custom_call.1} parent=1 // pred_region
      %64 = dma.done [#allocation7], 2048
    $region37: #{tpu_custom_call.1} parent=1 // pred_fallthru
      _
    // Predicated region
    $region38: #{tpu_custom_call.1} parent=1 // pred_check
      _
    $region39: #{tpu_custom_call.1} parent=1 // pred_check_branch
      %66 = sbr.rel (0) target = $region41
    $region40: #{tpu_custom_call.1} parent=1 // pred_region
      %67 = dma.done [#allocation7], 2048
    $region41: #{tpu_custom_call.1} parent=1 // pred_fallthru
      _
    %v68 = vld [vmem:[#allocation3] sm:$0xff]
    %v69 = vld [vmem:[#allocation6] sm:$0xff]
    %v70 = vld [vmem:[#allocation6 + $0x8] sm:$0xff]
    %v71 = vld [vmem:[#allocation6 + $0x10] sm:$0xff]
    %v72 = vld [vmem:[#allocation6 + $0x18] sm:$0xff]
    %v73 = vld [vmem:[#allocation6 + $0x20] sm:$0xff]
    %v74 = vld [vmem:[#allocation6 + $0x28] sm:$0xff]
    %v75 = vld [vmem:[#allocation6 + $0x30] sm:$0xff]
    %v76 = vld [vmem:[#allocation6 + $0x38] sm:$0xff]
    %v77 = vld [vmem:[#allocation6 + $0x40] sm:$0xff]
    %v78 = vld [vmem:[#allocation6 + $0x48] sm:$0xff]
    %v79 = vld [vmem:[#allocation6 + $0x50] sm:$0xff]
    %v80 = vld [vmem:[#allocation6 + $0x58] sm:$0xff]
    %v81 = vld [vmem:[#allocation6 + $0x60] sm:$0xff]
    %v82 = vld [vmem:[#allocation6 + $0x68] sm:$0xff]
    %v83 = vld [vmem:[#allocation6 + $0x70] sm:$0xff]
    %v84 = vld [vmem:[#allocation6 + $0x78] sm:$0xff]
    %v85 = vld [vmem:[%s2] sm:$0x1]
    %v87 = vlaneseq
    %v88 = vshrl.u32 %v87, 7
    %v89 = vsub.s32 0, %v88
    %v90 = vrot.slane %v85, %v89
    %92 = vmatprep.subr.mxu0 0.0
    %93 = vmatpush1.msra.mxu0 %v69
    %94 = vmatprep.subr.mxu0 0.0
    %95 = vmatpush1.msra.mxu0 %v70
    %96 = vmatprep.subr.mxu0 0.0
    %97 = vmatpush1.msra.mxu0 %v71
    %98 = vmatprep.subr.mxu0 0.0
    %99 = vmatpush1.msra.mxu0 %v72
    %100 = vmatprep.subr.mxu0 0.0
    %101 = vmatpush1.msra.mxu0 %v73
    %102 = vmatprep.subr.mxu0 0.0
    %103 = vmatpush1.msra.mxu0 %v74
    %104 = vmatprep.subr.mxu0 0.0
    %105 = vmatpush1.msra.mxu0 %v75
    %106 = vmatprep.subr.mxu0 0.0
    %107 = vmatpush1.msra.mxu0 %v76
    %108 = vmatprep.subr.mxu0 0.0
    %109 = vmatpush1.msra.mxu0 %v77
    %110 = vmatprep.subr.mxu0 0.0
    %111 = vmatpush1.msra.mxu0 %v78
    %112 = vmatprep.subr.mxu0 0.0
    %113 = vmatpush1.msra.mxu0 %v79
    %114 = vmatprep.subr.mxu0 0.0
    %115 = vmatpush1.msra.mxu0 %v80
    %116 = vmatprep.subr.mxu0 0.0
    %117 = vmatpush1.msra.mxu0 %v81
    %118 = vmatprep.subr.mxu0 0.0
    %119 = vmatpush1.msra.mxu0 %v82
    %120 = vmatprep.subr.mxu0 0.0
    %121 = vmatpush1.msra.mxu0 %v83
    %122 = vmatprep.subr.mxu0 0.0
    %123 = vmatpush1.msra.mxu0 %v84
    %124 = vmatprep.subr.mxu0 0.0
    %125 = vmatpush1.msra.mxu0 0.0
    %126 = vmatprep.subr.mxu0 0.0
    %127 = vmatpush1.msra.mxu0 0.0
    %128 = vmatprep.subr.mxu0 0.0
    %129 = vmatpush1.msra.mxu0 0.0
    %130 = vmatprep.subr.mxu0 0.0
    %131 = vmatpush1.msra.mxu0 0.0
    %132 = vmatprep.subr.mxu0 0.0
    %133 = vmatpush1.msra.mxu0 0.0
    %134 = vmatprep.subr.mxu0 0.0
    %135 = vmatpush1.msra.mxu0 0.0
    %136 = vmatprep.subr.mxu0 0.0
    %137 = vmatpush1.msra.mxu0 0.0
    %138 = vmatprep.subr.mxu0 0.0
    %139 = vmatpush1.msra.mxu0 0.0
    %140 = vmatprep.subr.mxu0 0.0
    %141 = vmatpush1.msra.mxu0 0.0
    %142 = vmatprep.subr.mxu0 0.0
    %143 = vmatpush1.msra.mxu0 0.0
    %144 = vmatprep.subr.mxu0 0.0
    %145 = vmatpush1.msra.mxu0 0.0
    %146 = vmatprep.subr.mxu0 0.0
    %147 = vmatpush1.msra.mxu0 0.0
    %148 = vmatprep.subr.mxu0 0.0
    %149 = vmatpush1.msra.mxu0 0.0
    %150 = vmatprep.subr.mxu0 0.0
    %151 = vmatpush1.msra.mxu0 0.0
    %152 = vmatprep.subr.mxu0 0.0
    %153 = vmatpush1.msra.mxu0 0.0
    %154 = vmatprep.subr.mxu0 0.0
    %155 = vmatpush1.msra.mxu0 0.0
    %156 = vmatprep.mubr.f32.mxu0 0.0
    %157 = vmatmul.mubr.f32.gmra.mrb[0].mxu0 %v68
    %v158 = vpop.f32.mrb[0].mxu0
    %v159 = vadd.f32 %v90, %v158
    %v160 = vpop.f32.mrb[0].mxu0
    %161 = vdwg.mxu0
    %v162 = vmax.f32 %v159, 0.0
    %v163 = vld [vmem:[#allocation8] sm:$0xff]
    %v164 = vld [vmem:[#allocation8 + $0x8] sm:$0xff]
    %v165 = vld [vmem:[#allocation8 + $0x10] sm:$0xff]
    %v166 = vld [vmem:[#allocation8 + $0x18] sm:$0xff]
    %v167 = vld [vmem:[#allocation8 + $0x20] sm:$0xff]
    %v168 = vld [vmem:[#allocation8 + $0x28] sm:$0xff]
    %v169 = vld [vmem:[#allocation8 + $0x30] sm:$0xff]
    %v170 = vld [vmem:[#allocation8 + $0x38] sm:$0xff]
    %v171 = vld [vmem:[#allocation8 + $0x40] sm:$0xff]
    %v172 = vld [vmem:[#allocation8 + $0x48] sm:$0xff]
    %v173 = vld [vmem:[#allocation8 + $0x50] sm:$0xff]
    %v174 = vld [vmem:[#allocation8 + $0x58] sm:$0xff]
    %v175 = vld [vmem:[#allocation8 + $0x60] sm:$0xff]
    %v176 = vld [vmem:[#allocation8 + $0x68] sm:$0xff]
    %v177 = vld [vmem:[#allocation8 + $0x70] sm:$0xff]
    %v178 = vld [vmem:[#allocation8 + $0x78] sm:$0xff]
    %v179 = vld [vmem:[%s4] sm:$0x1]
    %v181 = vlaneseq
    %v182 = vshrl.u32 %v181, 7
    %v183 = vsub.s32 0, %v182
    %v184 = vrot.slane %v179, %v183
    %186 = vmatprep.subr.mxu0 0.0
    %187 = vmatpush1.msra.mxu0 %v163
    %188 = vmatprep.subr.mxu0 0.0
    %189 = vmatpush1.msra.mxu0 %v164
    %190 = vmatprep.subr.mxu0 0.0
    %191 = vmatpush1.msra.mxu0 %v165
    %192 = vmatprep.subr.mxu0 0.0
    %193 = vmatpush1.msra.mxu0 %v166
    %194 = vmatprep.subr.mxu0 0.0
    %195 = vmatpush1.msra.mxu0 %v167
    %196 = vmatprep.subr.mxu0 0.0
    %197 = vmatpush1.msra.mxu0 %v168
    %198 = vmatprep.subr.mxu0 0.0
    %199 = vmatpush1.msra.mxu0 %v169
    %200 = vmatprep.subr.mxu0 0.0
    %201 = vmatpush1.msra.mxu0 %v170
    %202 = vmatprep.subr.mxu0 0.0
    %203 = vmatpush1.msra.mxu0 %v171
    %204 = vmatprep.subr.mxu0 0.0
    %205 = vmatpush1.msra.mxu0 %v172
    %206 = vmatprep.subr.mxu0 0.0
    %207 = vmatpush1.msra.mxu0 %v173
    %208 = vmatprep.subr.mxu0 0.0
    %209 = vmatpush1.msra.mxu0 %v174
    %210 = vmatprep.subr.mxu0 0.0
    %211 = vmatpush1.msra.mxu0 %v175
    %212 = vmatprep.subr.mxu0 0.0
    %213 = vmatpush1.msra.mxu0 %v176
    %214 = vmatprep.subr.mxu0 0.0
    %215 = vmatpush1.msra.mxu0 %v177
    %216 = vmatprep.subr.mxu0 0.0
    %217 = vmatpush1.msra.mxu0 %v178
    %218 = vmatprep.subr.mxu0 0.0
    %219 = vmatpush1.msra.mxu0 0.0
    %220 = vmatprep.subr.mxu0 0.0
    %221 = vmatpush1.msra.mxu0 0.0
    %222 = vmatprep.subr.mxu0 0.0
    %223 = vmatpush1.msra.mxu0 0.0
    %224 = vmatprep.subr.mxu0 0.0
    %225 = vmatpush1.msra.mxu0 0.0
    %226 = vmatprep.subr.mxu0 0.0
    %227 = vmatpush1.msra.mxu0 0.0
    %228 = vmatprep.subr.mxu0 0.0
    %229 = vmatpush1.msra.mxu0 0.0
    %230 = vmatprep.subr.mxu0 0.0
    %231 = vmatpush1.msra.mxu0 0.0
    %232 = vmatprep.subr.mxu0 0.0
    %233 = vmatpush1.msra.mxu0 0.0
    %234 = vmatprep.subr.mxu0 0.0
    %235 = vmatpush1.msra.mxu0 0.0
    %236 = vmatprep.subr.mxu0 0.0
    %237 = vmatpush1.msra.mxu0 0.0
    %238 = vmatprep.subr.mxu0 0.0
    %239 = vmatpush1.msra.mxu0 0.0
    %240 = vmatprep.subr.mxu0 0.0
    %241 = vmatpush1.msra.mxu0 0.0
    %242 = vmatprep.subr.mxu0 0.0
    %243 = vmatpush1.msra.mxu0 0.0
    %244 = vmatprep.subr.mxu0 0.0
    %245 = vmatpush1.msra.mxu0 0.0
    %246 = vmatprep.subr.mxu0 0.0
    %247 = vmatpush1.msra.mxu0 0.0
    %248 = vmatprep.subr.mxu0 0.0
    %249 = vmatpush1.msra.mxu0 0.0
    %250 = vmatprep.mubr.f32.mxu0 0.0
    %251 = vmatmul.mubr.f32.gmra.mrb[0].mxu0 %v162
    %v252 = vpop.f32.mrb[0].mxu0
    %v253 = vadd.f32 %v184, %v252
    %v254 = vpop.f32.mrb[0].mxu0
    %255 = vdwg.mxu0
    %v256 = vmax.f32 %v253, 0.0
    %v257 = vld [vmem:[%s5] sm:$0x1]
    %v258 = vld [vmem:[#allocation2] sm:$0x1]
    %260 = vset.pattern.permute.xlu0 0
    %261 = vperm.xlu0 %260, %v258
    %v262 = vpop.permute.xlu0 %261
    %v264 = vlaneseq
    %v265 = vshrl.u32 %v264, 7
    %v266 = vsub.s32 0, %v265
    %v267 = vrot.slane %v262, %v266
    %268 = vmatprep.subr.mxu0 0.0
    %269 = vmatpush1.xpose.msra.mxu0 %v256
    %270 = vmatprep.subr.mxu0 0.0
    %271 = vmatpush1.xpose.msra.mxu0 0.0
    %272 = vmatprep.subr.mxu0 0.0
    %273 = vmatpush1.xpose.msra.mxu0 0.0
    %274 = vmatprep.subr.mxu0 0.0
    %275 = vmatpush1.xpose.msra.mxu0 0.0
    %276 = vmatprep.subr.mxu0 0.0
    %277 = vmatpush1.xpose.msra.mxu0 0.0
    %278 = vmatprep.subr.mxu0 0.0
    %279 = vmatpush1.xpose.msra.mxu0 0.0
    %280 = vmatprep.subr.mxu0 0.0
    %281 = vmatpush1.xpose.msra.mxu0 0.0
    %282 = vmatprep.subr.mxu0 0.0
    %283 = vmatpush1.xpose.msra.mxu0 0.0
    %284 = vmatprep.subr.mxu0 0.0
    %285 = vmatpush1.xpose.msra.mxu0 0.0
    %286 = vmatprep.subr.mxu0 0.0
    %287 = vmatpush1.xpose.msra.mxu0 0.0
    %288 = vmatprep.subr.mxu0 0.0
    %289 = vmatpush1.xpose.msra.mxu0 0.0
    %290 = vmatprep.subr.mxu0 0.0
    %291 = vmatpush1.xpose.msra.mxu0 0.0
    %292 = vmatprep.subr.mxu0 0.0
    %293 = vmatpush1.xpose.msra.mxu0 0.0
    %294 = vmatprep.subr.mxu0 0.0
    %295 = vmatpush1.xpose.msra.mxu0 0.0
    %296 = vmatprep.subr.mxu0 0.0
    %297 = vmatpush1.xpose.msra.mxu0 0.0
    %298 = vmatprep.subr.mxu0 0.0
    %299 = vmatpush1.xpose.msra.mxu0 0.0
    %300 = vmatprep.subr.mxu0 0.0
    %301 = vmatpush1.xpose.msra.mxu0 0.0
    %302 = vmatprep.subr.mxu0 0.0
    %303 = vmatpush1.xpose.msra.mxu0 0.0
    %304 = vmatprep.subr.mxu0 0.0
    %305 = vmatpush1.xpose.msra.mxu0 0.0
    %306 = vmatprep.subr.mxu0 0.0
    %307 = vmatpush1.xpose.msra.mxu0 0.0
    %308 = vmatprep.subr.mxu0 0.0
    %309 = vmatpush1.xpose.msra.mxu0 0.0
    %310 = vmatprep.subr.mxu0 0.0
    %311 = vmatpush1.xpose.msra.mxu0 0.0
    %312 = vmatprep.subr.mxu0 0.0
    %313 = vmatpush1.xpose.msra.mxu0 0.0
    %314 = vmatprep.subr.mxu0 0.0
    %315 = vmatpush1.xpose.msra.mxu0 0.0
    %316 = vmatprep.subr.mxu0 0.0
    %317 = vmatpush1.xpose.msra.mxu0 0.0
    %318 = vmatprep.subr.mxu0 0.0
    %319 = vmatpush1.xpose.msra.mxu0 0.0
    %320 = vmatprep.subr.mxu0 0.0
    %321 = vmatpush1.xpose.msra.mxu0 0.0
    %322 = vmatprep.subr.mxu0 0.0
    %323 = vmatpush1.xpose.msra.mxu0 0.0
    %324 = vmatprep.subr.mxu0 0.0
    %325 = vmatpush1.xpose.msra.mxu0 0.0
    %326 = vmatprep.subr.mxu0 0.0
    %327 = vmatpush1.xpose.msra.mxu0 0.0
    %328 = vmatprep.subr.mxu0 0.0
    %329 = vmatpush1.xpose.msra.mxu0 0.0
    %330 = vmatprep.subr.mxu0 0.0
    %331 = vmatpush1.xpose.msra.mxu0 0.0
    %332 = vmatprep.mubr.f32.mxu0 0.0
    %333 = vmatmul.mubr.f32.gmra.mrb[0].mxu0 %v257
    %v334 = vpop.f32.mrb[0].mxu0
    %v335 = vadd.f32 %v267, %v334
    %v336 = vpop.f32.mrb[0].mxu0
    %337 = vdwg.mxu0
    %v338 = vsub.f32 0.0, %v335
    %v339 = vmul.f32 %v338, 1.442695
    %v340 = vpow.pop %v339
    %v341 = vadd.f32 %v340, 1.0
    %v342 = vrcp.pop %v341
    %vm343 = vcmask 57344
    %344 = vst.msk [vmem:[#allocation9] sm:$0x1] %vm343, %v342
    // Predicated region
    $region42: #{tpu_custom_call.1} parent=1 // pred_check
      _
    $region43: #{tpu_custom_call.1} parent=1 // pred_check_branch
      %346 = sbr.rel (0) target = $region45
    $region44: #{tpu_custom_call.1} parent=1 // pred_region
      %s348 = ssub.s32 16, 16
      %349 = vsyncadd [#allocation5], %s348
      %s351 = sshll.u32 [#allocation9], 4
      %s352 = int_to_ptr.vmem [resolvable:$true] %s351
      %354 = dma.vmem_to_hbm [thread:$0]  %s352, 16, %s7, [#allocation5]
    $region45: #{tpu_custom_call.1} parent=1 // pred_fallthru
      _
    // Predicated region
    $region46: #{tpu_custom_call.1} parent=1 // pred_check
      _
    $region47: #{tpu_custom_call.1} parent=1 // pred_check_branch
      %356 = sbr.rel (0) target = $region49
    $region48: #{tpu_custom_call.1} parent=1 // pred_region
      %357 = dma.done [#allocation5], 16
    $region49: #{tpu_custom_call.1} parent=1 // pred_fallthru
      _
    %358 = vsyncpa [#allocation4], 1
    %359 = vsyncpa [#allocation7], 1
    %360 = vsyncpa [#allocation5], 1

// kernel: tpu_custom_call.1
$region0: #{tpu_custom_call.1}
  #allocation0 [shape = 'u32[]', space=smem, size = 0x4, offset = 0x4, fixed_abs, tag = 'smem constant byte address 0x4 - core index']
  #allocation1 [shape = 'u32[144,128]{1,0:T(1,128)}', space=vmem, size = 0x12000, scoped, tag = 'internal scratch']
  #allocation2 [shape = 'f32[1,1]{1,0:T(1,128)S(1)}', space=vmem, size = 0x200, scoped, tag = 'scoped memory for tpu_custom_call.1']
  %s0 = inlined_call_operand.hbm [shape: f32[8,128], index: 0, kind: input, shape index: {}]
  %s1 = inlined_call_operand.hbm [shape: f32[128,128], index: 1, kind: input, shape index: {}]
  %s2 = inlined_call_operand.vmem [shape: f32[1,128], index: 2, kind: input, shape index: {}]
  %s3 = inlined_call_operand.hbm [shape: f32[128,128], index: 3, kind: input, shape index: {}]
  %s4 = inlined_call_operand.vmem [shape: f32[1,128], index: 4, kind: input, shape index: {}]
  %s5 = inlined_call_operand.vmem [shape: f32[1,128], index: 5, kind: input, shape index: {}]
  %s6 = inlined_call_operand.<no memory space> [shape: f32[1,1], index: 6, kind: input, shape index: {}]
  %s7 = inlined_call_operand.hbm [shape: f32[1,8], index: 7, kind: output, shape index: {}]
  %s8 = sld [smem:[#allocation0]]
  $region50: #{tpu_custom_call.1} parent=0
    _
  %s10 = ssub.s32 1, %s8
  %s11 = scalar_select 0, %s10, %s8
  %v12 = vstv %s6
  %13 = vst [vmem:[#allocation2] sm:$0x1] %v12
  $region1: #{tpu_custom_call.1} parent=0
    #allocation3 [shape = 'u8[4096]{0}', space=vmem, size = 0x1000, scoped, tag = 'input window, operand 0, single buffered']
    #allocation4 [shape = 's32[1]{0}', space=sflag, size = 0x4, scoped, tag = 'scoped memory for tpu_custom_call.1']
    #allocation5 [shape = 's32[1]{0}', space=sflag, size = 0x4, scoped, tag = 'scoped memory for tpu_custom_call.1']
    #allocation6 [shape = 'u8[65536]{0}', space=vmem, size = 0x10000, scoped, tag = 'input window, operand 1, single buffered']
    #allocation7 [shape = 's32[1]{0}', space=sflag, size = 0x4, scoped, tag = 'scoped memory for tpu_custom_call.1']
    #allocation8 [shape = 'u8[65536]{0}', space=vmem, size = 0x10000, scoped, tag = 'input window, operand 3, single buffered']
    #allocation9 [shape = 'u8[512]{0}', space=vmem, size = 0x400, scoped, tag = 'output window, operand 0, single buffered']
    %14 = vsyncpa [#allocation4], 0
    %15 = vsyncpa [#allocation7], 0
    %16 = vsyncpa [#allocation5], 0
    // Predicated region
    $region2: #{tpu_custom_call.1} parent=1 // pred_check
      _
    $region3: #{tpu_custom_call.1} parent=1 // pred_check_branch
      %18 = sbr.rel (0) target = $region5
    $region4: #{tpu_custom_call.1} parent=1 // pred_region
      %s20 = ssub.s32 128, 128
      %21 = vsyncadd [#allocation4], %s20
      %s23 = sshll.u32 [#allocation3], 4
      %s24 = int_to_ptr.vmem [resolvable:$true] %s23
      %26 = dma.hbm_to_vmem [thread:$0]  %s0, 128, %s24, [#allocation4]
    $region5: #{tpu_custom_call.1} parent=1 // pred_fallthru
      _
    // Predicated region
    $region6: #{tpu_custom_call.1} parent=1 // pred_check
      _
    $region7: #{tpu_custom_call.1} parent=1 // pred_check_branch
      %28 = sbr.rel (0) target = $region9
    $region8: #{tpu_custom_call.1} parent=1 // pred_region
      %s30 = ssub.s32 2048, 2048
      %31 = vsyncadd [#allocation7], %s30
      %s32 = sshll.u32 [#allocation6], 4
      %s33 = int_to_ptr.vmem [resolvable:$true] %s32
      %38 = dma.hbm_to_vmem [thread:$0]  %s1, 2048, %s33, [#allocation7], 128, 128, 8
    $region9: #{tpu_custom_call.1} parent=1 // pred_fallthru
      _
    // Predicated region
    $region10: #{tpu_custom_call.1} parent=1 // pred_check
      _
    $region11: #{tpu_custom_call.1} parent=1 // pred_check_branch
      %40 = sbr.rel (0) target = $region13
    $region12: #{tpu_custom_call.1} parent=1 // pred_region
      _
    $region13: #{tpu_custom_call.1} parent=1 // pred_fallthru
      _
    // Predicated region
    $region14: #{tpu_custom_call.1} parent=1 // pred_check
      _
    $region15: #{tpu_custom_call.1} parent=1 // pred_check_branch
      %42 = sbr.rel (0) target = $region17
    $region16: #{tpu_custom_call.1} parent=1 // pred_region
      %s44 = ssub.s32 2048, 2048
      %45 = vsyncadd [#allocation7], %s44
      %s46 = sshll.u32 [#allocation8], 4
      %s47 = int_to_ptr.vmem [resolvable:$true] %s46
      %52 = dma.hbm_to_vmem [thread:$0]  %s3, 2048, %s47, [#allocation7], 128, 128, 8
    $region17: #{tpu_custom_call.1} parent=1 // pred_fallthru
      _
    // Predicated region
    $region18: #{tpu_custom_call.1} parent=1 // pred_check
      _
    $region19: #{tpu_custom_call.1} parent=1 // pred_check_branch
      %54 = sbr.rel (0) target = $region21
    $region20: #{tpu_custom_call.1} parent=1 // pred_region
      _
    $region21: #{tpu_custom_call.1} parent=1 // pred_fallthru
      _
    // Predicated region
    $region22: #{tpu_custom_call.1} parent=1 // pred_check
      _
    $region23: #{tpu_custom_call.1} parent=1 // pred_check_branch
      %56 = sbr.rel (0) target = $region25
    $region24: #{tpu_custom_call.1} parent=1 // pred_region
      _
    $region25: #{tpu_custom_call.1} parent=1 // pred_fallthru
      _
    // Predicated region
    $region26: #{tpu_custom_call.1} parent=1 // pred_check
      _
    $region27: #{tpu_custom_call.1} parent=1 // pred_check_branch
      %58 = sbr.rel (0) target = $region29
    $region28: #{tpu_custom_call.1} parent=1 // pred_region
      _
    $region29: #{tpu_custom_call.1} parent=1 // pred_fallthru
      _
    // Predicated region
    $region30: #{tpu_custom_call.1} parent=1 // pred_check
      _
    $region31: #{tpu_custom_call.1} parent=1 // pred_check_branch
      %60 = sbr.rel (0) target = $region33
    $region32: #{tpu_custom_call.1} parent=1 // pred_region
      %61 = dma.done [#allocation4], 128
    $region33: #{tpu_custom_call.1} parent=1 // pred_fallthru
      _
    // Predicated region
    $region34: #{tpu_custom_call.1} parent=1 // pred_check
      _
    $region35: #{tpu_custom_call.1} parent=1 // pred_check_branch
      %63 = sbr.rel (0) target = $region37
    $region36: #{tpu_custom_call.1} parent=1 // pred_region
      %64 = dma.done [#allocation7], 2048
    $region37: #{tpu_custom_call.1} parent=1 // pred_fallthru
      _
    // Predicated region
    $region38: #{tpu_custom_call.1} parent=1 // pred_check
      _
    $region39: #{tpu_custom_call.1} parent=1 // pred_check_branch
      %66 = sbr.rel (0) target = $region41
    $region40: #{tpu_custom_call.1} parent=1 // pred_region
      %67 = dma.done [#allocation7], 2048
    $region41: #{tpu_custom_call.1} parent=1 // pred_fallthru
      _
    %v68 = vld [vmem:[#allocation3] sm:$0xff]
    %v69 = vld [vmem:[#allocation6] sm:$0xff]
    %v70 = vld [vmem:[#allocation6 + $0x8] sm:$0xff]
    %v71 = vld [vmem:[#allocation6 + $0x10] sm:$0xff]
    %v72 = vld [vmem:[#allocation6 + $0x18] sm:$0xff]
    %v73 = vld [vmem:[#allocation6 + $0x20] sm:$0xff]
    %v74 = vld [vmem:[#allocation6 + $0x28] sm:$0xff]
    %v75 = vld [vmem:[#allocation6 + $0x30] sm:$0xff]
    %v76 = vld [vmem:[#allocation6 + $0x38] sm:$0xff]
    %v77 = vld [vmem:[#allocation6 + $0x40] sm:$0xff]
    %v78 = vld [vmem:[#allocation6 + $0x48] sm:$0xff]
    %v79 = vld [vmem:[#allocation6 + $0x50] sm:$0xff]
    %v80 = vld [vmem:[#allocation6 + $0x58] sm:$0xff]
    %v81 = vld [vmem:[#allocation6 + $0x60] sm:$0xff]
    %v82 = vld [vmem:[#allocation6 + $0x68] sm:$0xff]
    %v83 = vld [vmem:[#allocation6 + $0x70] sm:$0xff]
    %v84 = vld [vmem:[#allocation6 + $0x78] sm:$0xff]
    %v85 = vld [vmem:[%s2] sm:$0x1]
    %v87 = vlaneseq
    %v88 = vshrl.u32 %v87, 7
    %v89 = vsub.s32 0, %v88
    %v90 = vrot.slane %v85, %v89
    %92 = vmatprep.subr.mxu0 0.0
    %93 = vmatpush1.msra.mxu0 %v69
    %94 = vmatprep.subr.mxu0 0.0
    %95 = vmatpush1.msra.mxu0 %v70
    %96 = vmatprep.subr.mxu0 0.0
    %97 = vmatpush1.msra.mxu0 %v71
    %98 = vmatprep.subr.mxu0 0.0
    %99 = vmatpush1.msra.mxu0 %v72
    %100 = vmatprep.subr.mxu0 0.0
    %101 = vmatpush1.msra.mxu0 %v73
    %102 = vmatprep.subr.mxu0 0.0
    %103 = vmatpush1.msra.mxu0 %v74
    %104 = vmatprep.subr.mxu0 0.0
    %105 = vmatpush1.msra.mxu0 %v75
    %106 = vmatprep.subr.mxu0 0.0
    %107 = vmatpush1.msra.mxu0 %v76
    %108 = vmatprep.subr.mxu0 0.0
    %109 = vmatpush1.msra.mxu0 %v77
    %110 = vmatprep.subr.mxu0 0.0
    %111 = vmatpush1.msra.mxu0 %v78
    %112 = vmatprep.subr.mxu0 0.0
    %113 = vmatpush1.msra.mxu0 %v79
    %114 = vmatprep.subr.mxu0 0.0
    %115 = vmatpush1.msra.mxu0 %v80
    %116 = vmatprep.subr.mxu0 0.0
    %117 = vmatpush1.msra.mxu0 %v81
    %118 = vmatprep.subr.mxu0 0.0
    %119 = vmatpush1.msra.mxu0 %v82
    %120 = vmatprep.subr.mxu0 0.0
    %121 = vmatpush1.msra.mxu0 %v83
    %122 = vmatprep.subr.mxu0 0.0
    %123 = vmatpush1.msra.mxu0 %v84
    %124 = vmatprep.subr.mxu0 0.0
    %125 = vmatpush1.msra.mxu0 0.0
    %126 = vmatprep.subr.mxu0 0.0
    %127 = vmatpush1.msra.mxu0 0.0
    %128 = vmatprep.subr.mxu0 0.0
    %129 = vmatpush1.msra.mxu0 0.0
    %130 = vmatprep.subr.mxu0 0.0
    %131 = vmatpush1.msra.mxu0 0.0
    %132 = vmatprep.subr.mxu0 0.0
    %133 = vmatpush1.msra.mxu0 0.0
    %134 = vmatprep.subr.mxu0 0.0
    %135 = vmatpush1.msra.mxu0 0.0
    %136 = vmatprep.subr.mxu0 0.0
    %137 = vmatpush1.msra.mxu0 0.0
    %138 = vmatprep.subr.mxu0 0.0
    %139 = vmatpush1.msra.mxu0 0.0
    %140 = vmatprep.subr.mxu0 0.0
    %141 = vmatpush1.msra.mxu0 0.0
    %142 = vmatprep.subr.mxu0 0.0
    %143 = vmatpush1.msra.mxu0 0.0
    %144 = vmatprep.subr.mxu0 0.0
    %145 = vmatpush1.msra.mxu0 0.0
    %146 = vmatprep.subr.mxu0 0.0
    %147 = vmatpush1.msra.mxu0 0.0
    %148 = vmatprep.subr.mxu0 0.0
    %149 = vmatpush1.msra.mxu0 0.0
    %150 = vmatprep.subr.mxu0 0.0
    %151 = vmatpush1.msra.mxu0 0.0
    %152 = vmatprep.subr.mxu0 0.0
    %153 = vmatpush1.msra.mxu0 0.0
    %154 = vmatprep.subr.mxu0 0.0
    %155 = vmatpush1.msra.mxu0 0.0
    %156 = vmatprep.mubr.f32.mxu0 0.0
    %157 = vmatmul.mubr.f32.gmra.mrb[0].mxu0 %v68
    %v158 = vpop.f32.mrb[0].mxu0
    %v159 = vadd.f32 %v90, %v158
    %v160 = vpop.f32.mrb[0].mxu0
    %161 = vdwg.mxu0
    %v162 = vmax.f32 %v159, 0.0
    %v163 = vld [vmem:[#allocation8] sm:$0xff]
    %v164 = vld [vmem:[#allocation8 + $0x8] sm:$0xff]
    %v165 = vld [vmem:[#allocation8 + $0x10] sm:$0xff]
    %v166 = vld [vmem:[#allocation8 + $0x18] sm:$0xff]
    %v167 = vld [vmem:[#allocation8 + $0x20] sm:$0xff]
    %v168 = vld [vmem:[#allocation8 + $0x28] sm:$0xff]
    %v169 = vld [vmem:[#allocation8 + $0x30] sm:$0xff]
    %v170 = vld [vmem:[#allocation8 + $0x38] sm:$0xff]
    %v171 = vld [vmem:[#allocation8 + $0x40] sm:$0xff]
    %v172 = vld [vmem:[#allocation8 + $0x48] sm:$0xff]
    %v173 = vld [vmem:[#allocation8 + $0x50] sm:$0xff]
    %v174 = vld [vmem:[#allocation8 + $0x58] sm:$0xff]
    %v175 = vld [vmem:[#allocation8 + $0x60] sm:$0xff]
    %v176 = vld [vmem:[#allocation8 + $0x68] sm:$0xff]
    %v177 = vld [vmem:[#allocation8 + $0x70] sm:$0xff]
    %v178 = vld [vmem:[#allocation8 + $0x78] sm:$0xff]
    %v179 = vld [vmem:[%s4] sm:$0x1]
    %v181 = vlaneseq
    %v182 = vshrl.u32 %v181, 7
    %v183 = vsub.s32 0, %v182
    %v184 = vrot.slane %v179, %v183
    %186 = vmatprep.subr.mxu0 0.0
    %187 = vmatpush1.msra.mxu0 %v163
    %188 = vmatprep.subr.mxu0 0.0
    %189 = vmatpush1.msra.mxu0 %v164
    %190 = vmatprep.subr.mxu0 0.0
    %191 = vmatpush1.msra.mxu0 %v165
    %192 = vmatprep.subr.mxu0 0.0
    %193 = vmatpush1.msra.mxu0 %v166
    %194 = vmatprep.subr.mxu0 0.0
    %195 = vmatpush1.msra.mxu0 %v167
    %196 = vmatprep.subr.mxu0 0.0
    %197 = vmatpush1.msra.mxu0 %v168
    %198 = vmatprep.subr.mxu0 0.0
    %199 = vmatpush1.msra.mxu0 %v169
    %200 = vmatprep.subr.mxu0 0.0
    %201 = vmatpush1.msra.mxu0 %v170
    %202 = vmatprep.subr.mxu0 0.0
    %203 = vmatpush1.msra.mxu0 %v171
    %204 = vmatprep.subr.mxu0 0.0
    %205 = vmatpush1.msra.mxu0 %v172
    %206 = vmatprep.subr.mxu0 0.0
    %207 = vmatpush1.msra.mxu0 %v173
    %208 = vmatprep.subr.mxu0 0.0
    %209 = vmatpush1.msra.mxu0 %v174
    %210 = vmatprep.subr.mxu0 0.0
    %211 = vmatpush1.msra.mxu0 %v175
    %212 = vmatprep.subr.mxu0 0.0
    %213 = vmatpush1.msra.mxu0 %v176
    %214 = vmatprep.subr.mxu0 0.0
    %215 = vmatpush1.msra.mxu0 %v177
    %216 = vmatprep.subr.mxu0 0.0
    %217 = vmatpush1.msra.mxu0 %v178
    %218 = vmatprep.subr.mxu0 0.0
    %219 = vmatpush1.msra.mxu0 0.0
    %220 = vmatprep.subr.mxu0 0.0
    %221 = vmatpush1.msra.mxu0 0.0
    %222 = vmatprep.subr.mxu0 0.0
    %223 = vmatpush1.msra.mxu0 0.0
    %224 = vmatprep.subr.mxu0 0.0
    %225 = vmatpush1.msra.mxu0 0.0
    %226 = vmatprep.subr.mxu0 0.0
    %227 = vmatpush1.msra.mxu0 0.0
    %228 = vmatprep.subr.mxu0 0.0
    %229 = vmatpush1.msra.mxu0 0.0
    %230 = vmatprep.subr.mxu0 0.0
    %231 = vmatpush1.msra.mxu0 0.0
    %232 = vmatprep.subr.mxu0 0.0
    %233 = vmatpush1.msra.mxu0 0.0
    %234 = vmatprep.subr.mxu0 0.0
    %235 = vmatpush1.msra.mxu0 0.0
    %236 = vmatprep.subr.mxu0 0.0
    %237 = vmatpush1.msra.mxu0 0.0
    %238 = vmatprep.subr.mxu0 0.0
    %239 = vmatpush1.msra.mxu0 0.0
    %240 = vmatprep.subr.mxu0 0.0
    %241 = vmatpush1.msra.mxu0 0.0
    %242 = vmatprep.subr.mxu0 0.0
    %243 = vmatpush1.msra.mxu0 0.0
    %244 = vmatprep.subr.mxu0 0.0
    %245 = vmatpush1.msra.mxu0 0.0
    %246 = vmatprep.subr.mxu0 0.0
    %247 = vmatpush1.msra.mxu0 0.0
    %248 = vmatprep.subr.mxu0 0.0
    %249 = vmatpush1.msra.mxu0 0.0
    %250 = vmatprep.mubr.f32.mxu0 0.0
    %251 = vmatmul.mubr.f32.gmra.mrb[0].mxu0 %v162
    %v252 = vpop.f32.mrb[0].mxu0
    %v253 = vadd.f32 %v184, %v252
    %v254 = vpop.f32.mrb[0].mxu0
    %255 = vdwg.mxu0
    %v256 = vmax.f32 %v253, 0.0
    %v257 = vld [vmem:[%s5] sm:$0x1]
    %v258 = vld [vmem:[#allocation2] sm:$0x1]
    %260 = vset.pattern.permute.xlu0 0
    %261 = vperm.xlu0 %260, %v258
    %v262 = vpop.permute.xlu0 %261
    %v264 = vlaneseq
    %v265 = vshrl.u32 %v264, 7
    %v266 = vsub.s32 0, %v265
    %v267 = vrot.slane %v262, %v266
    %268 = vmatprep.subr.mxu0 0.0
    %269 = vmatpush1.xpose.msra.mxu0 %v256
    %270 = vmatprep.subr.mxu0 0.0
    %271 = vmatpush1.xpose.msra.mxu0 0.0
    %272 = vmatprep.subr.mxu0 0.0
    %273 = vmatpush1.xpose.msra.mxu0 0.0
    %274 = vmatprep.subr.mxu0 0.0
    %275 = vmatpush1.xpose.msra.mxu0 0.0
    %276 = vmatprep.subr.mxu0 0.0
    %277 = vmatpush1.xpose.msra.mxu0 0.0
    %278 = vmatprep.subr.mxu0 0.0
    %279 = vmatpush1.xpose.msra.mxu0 0.0
    %280 = vmatprep.subr.mxu0 0.0
    %281 = vmatpush1.xpose.msra.mxu0 0.0
    %282 = vmatprep.subr.mxu0 0.0
    %283 = vmatpush1.xpose.msra.mxu0 0.0
    %284 = vmatprep.subr.mxu0 0.0
    %285 = vmatpush1.xpose.msra.mxu0 0.0
    %286 = vmatprep.subr.mxu0 0.0
    %287 = vmatpush1.xpose.msra.mxu0 0.0
    %288 = vmatprep.subr.mxu0 0.0
    %289 = vmatpush1.xpose.msra.mxu0 0.0
    %290 = vmatprep.subr.mxu0 0.0
    %291 = vmatpush1.xpose.msra.mxu0 0.0
    %292 = vmatprep.subr.mxu0 0.0
    %293 = vmatpush1.xpose.msra.mxu0 0.0
    %294 = vmatprep.subr.mxu0 0.0
    %295 = vmatpush1.xpose.msra.mxu0 0.0
    %296 = vmatprep.subr.mxu0 0.0
    %297 = vmatpush1.xpose.msra.mxu0 0.0
    %298 = vmatprep.subr.mxu0 0.0
    %299 = vmatpush1.xpose.msra.mxu0 0.0
    %300 = vmatprep.subr.mxu0 0.0
    %301 = vmatpush1.xpose.msra.mxu0 0.0
    %302 = vmatprep.subr.mxu0 0.0
    %303 = vmatpush1.xpose.msra.mxu0 0.0
    %304 = vmatprep.subr.mxu0 0.0
    %305 = vmatpush1.xpose.msra.mxu0 0.0
    %306 = vmatprep.subr.mxu0 0.0
    %307 = vmatpush1.xpose.msra.mxu0 0.0
    %308 = vmatprep.subr.mxu0 0.0
    %309 = vmatpush1.xpose.msra.mxu0 0.0
    %310 = vmatprep.subr.mxu0 0.0
    %311 = vmatpush1.xpose.msra.mxu0 0.0
    %312 = vmatprep.subr.mxu0 0.0
    %313 = vmatpush1.xpose.msra.mxu0 0.0
    %314 = vmatprep.subr.mxu0 0.0
    %315 = vmatpush1.xpose.msra.mxu0 0.0
    %316 = vmatprep.subr.mxu0 0.0
    %317 = vmatpush1.xpose.msra.mxu0 0.0
    %318 = vmatprep.subr.mxu0 0.0
    %319 = vmatpush1.xpose.msra.mxu0 0.0
    %320 = vmatprep.subr.mxu0 0.0
    %321 = vmatpush1.xpose.msra.mxu0 0.0
    %322 = vmatprep.subr.mxu0 0.0
    %323 = vmatpush1.xpose.msra.mxu0 0.0
    %324 = vmatprep.subr.mxu0 0.0
    %325 = vmatpush1.xpose.msra.mxu0 0.0
    %326 = vmatprep.subr.mxu0 0.0
    %327 = vmatpush1.xpose.msra.mxu0 0.0
    %328 = vmatprep.subr.mxu0 0.0
    %329 = vmatpush1.xpose.msra.mxu0 0.0
    %330 = vmatprep.subr.mxu0 0.0
    %331 = vmatpush1.xpose.msra.mxu0 0.0
    %332 = vmatprep.mubr.f32.mxu0 0.0
    %333 = vmatmul.mubr.f32.gmra.mrb[0].mxu0 %v257
    %v334 = vpop.f32.mrb[0].mxu0
    %v335 = vadd.f32 %v267, %v334
    %v336 = vpop.f32.mrb[0].mxu0
    %337 = vdwg.mxu0
    %v338 = vsub.f32 0.0, %v335
    %v339 = vmul.f32 %v338, 1.442695
    %v340 = vpow.pop %v339
    %v341 = vadd.f32 %v340, 1.0
    %v342 = vrcp.pop %v341
    %vm343 = vcmask 57344
    %344 = vst.msk [vmem:[#allocation9] sm:$0x1] %vm343, %v342
    // Predicated region
    $region42: #{tpu_custom_call.1} parent=1 // pred_check
      _
    $region43: #{tpu_custom_call.1} parent=1 // pred_check_branch
      %346 = sbr.rel (0) target = $region45
    $region44: #{tpu_custom_call.1} parent=1 // pred_region
      %s348 = ssub.s32 16, 16
      %349 = vsyncadd [#allocation5], %s348
      %s351 = sshll.u32 [#allocation9], 4
      %s352 = int_to_ptr.vmem [resolvable:$true] %s351
      %354 = dma.vmem_to_hbm [thread:$0]  %s352, 16, %s7, [#allocation5]
    $region45: #{tpu_custom_call.1} parent=1 // pred_fallthru
      _
    // Predicated region
    $region46: #{tpu_custom_call.1} parent=1 // pred_check
      _
    $region47: #{tpu_custom_call.1} parent=1 // pred_check_branch
      %356 = sbr.rel (0) target = $region49
    $region48: #{tpu_custom_call.1} parent=1 // pred_region
      %357 = dma.done [#allocation5], 16
    $region49: #{tpu_custom_call.1} parent=1 // pred_fallthru
      _
    %358 = vsyncpa [#allocation4], 1
    %359 = vsyncpa [#allocation7], 1
    %360 = vsyncpa [#allocation5], 1

</llo_original>
